<compile_context>
chip_gen: v6e
topology: v6e:2x2x1
jax: 0.10.0
libtpu: 0.0.40
codegen_flags: <defaults>
</compile_context>

<pallas_src>
import functools

import jax
import jax.numpy as jnp
from jax import lax
from jax.experimental import pallas as pl
from jax.experimental.pallas import tpu as pltpu

EPS = 1e-5


# ----------------------------------------------------------------------------
# Small helpers
# ----------------------------------------------------------------------------
def _round_down(v, m):
    return (v // m) * m


def _round_up(v, m):
    return -(-v // m) * m


@functools.lru_cache(maxsize=None)
def _vmem_capacity_bytes():
    """Per-core VMEM capacity; conservative fallback if the query fails."""
    try:
        cap = int(getattr(pltpu.get_tpu_info(), "vmem_capacity_bytes", 0))
        if cap > 0:
            return cap
    except Exception:
        pass
    return 64 * 1024 * 1024      # v7x per-core size: safe on every generation


def _budgets():
    cap = _vmem_capacity_bytes()
    stream_budget = (cap * 11) // 20                  # ~55%: streams + f32 temps
    vmem_limit = min((cap * 17) // 20, cap - (4 << 20))
    return stream_budget, vmem_limit


def _sublane_multiple(*dtypes):
    """Minimum legal sublane multiple for the narrowest participating dtype."""
    sub = 8
    for dt in dtypes:
        sub = max(sub, 32 // max(1, jnp.dtype(dt).itemsize))
    return sub


# ----------------------------------------------------------------------------
# Single-pass kernel: whole (B, HW) reduction extent resident per channel block
# ----------------------------------------------------------------------------
def _fused_kernel(x_ref, lat_ref, w_ref, g_ref, b_ref, o_ref, *,
                  apply_relu1, combine_in_io, inv_count, pad_count, nb):
    # x_ref, lat_ref, o_ref : [B, tc, HWp];  params : [tc, 1] f32
    w = w_ref[...]
    g = g_ref[...]
    bb = b_ref[...]

    # Pass 1: per-channel mean of side = lateral * w over (B, HW_true).
    # Per-batch slab keeps f32 temporaries to [tc, HWp] (not [B, tc, HWp]).
    def _sum_body(i, acc):
        side = lat_ref[i].astype(jnp.float32) * w              # [tc, HWp]
        return acc + jnp.sum(side, axis=-1, keepdims=True)

    s = lax.fori_loop(0, nb, _sum_body, jnp.zeros_like(w))
    mean = s * inv_count

    # Pass 2: centered sum of squares (matches E[(x-mean)^2]).  Zero-padded
    # lanes each contribute mean^2; removed analytically below.
    def _var_body(i, acc):
        d = lat_ref[i].astype(jnp.float32) * w - mean
        return acc + jnp.sum(d * d, axis=-1, keepdims=True)

    css = lax.fori_loop(0, nb, _var_body, jnp.zeros_like(w))
    if pad_count:
        css = css - pad_count * (mean * mean)
    var = css * inv_count
    rstd = lax.rsqrt(var + EPS)

    scale = rstd * g                            # fold BN into one scale/shift
    shift = bb - mean * scale
    wscale = w * scale                          # fold the channel modulation

    # Pass 3: normalize lateral, combine with x, relus.
    def _apply_body(i, c):
        y = lat_ref[i].astype(jnp.float32) * wscale + shift
        if apply_relu1:
            y = jnp.maximum(y, 0.0)
        if combine_in_io:                       # bf16 add+relu (lower VALU load)
            out = jnp.maximum(x_ref[i] + y.astype(o_ref.dtype), 0)
        else:
            out = jnp.maximum(x_ref[i].astype(jnp.float32) + y,
                              0.0).astype(o_ref.dtype)
        o_ref[i] = out
        return c

    lax.fori_loop(0, nb, _apply_body, 0)


# ----------------------------------------------------------------------------
# Two-pass streaming path (huge B*H*W): pass 1 = stats, pass 2 = apply.
# ----------------------------------------------------------------------------
def _stats_kernel(lat_ref, w_ref, mean_ref, rstd_ref, sum_acc, ssq_acc, *,
                  inv_count, eps):
    b = pl.program_id(1)
    s = pl.program_id(2)

    @pl.when((b == 0) & (s == 0))
    def _():
        sum_acc[...] = jnp.zeros_like(sum_acc)
        ssq_acc[...] = jnp.zeros_like(ssq_acc)

    # TODO(synk): E[x^2]-mean^2 here; switch to shifted/Welford accumulation if
    #             cancellation becomes an issue for real activation statistics.
    side = lat_ref[0].astype(jnp.float32) * w_ref[...]          # [tc, ts]
    sum_acc[...] += jnp.sum(side, axis=-1, keepdims=True)
    ssq_acc[...] += jnp.sum(side * side, axis=-1, keepdims=True)

    @pl.when((b == pl.num_programs(1) - 1) & (s == pl.num_programs(2) - 1))
    def _():
        mean = sum_acc[...] * inv_count
        var = ssq_acc[...] * inv_count - mean * mean
        mean_ref[...] = mean
        rstd_ref[...] = lax.rsqrt(var + eps)


def _apply_kernel(x_ref, lat_ref, w_ref, g_ref, b_ref, mean_ref, rstd_ref,
                  o_ref, *, apply_relu1, combine_in_io):
    scale = rstd_ref[...] * g_ref[...]                          # [tc, 1]
    shift = b_ref[...] - mean_ref[...] * scale
    wscale = w_ref[...] * scale                                 # fold channel-mod
    y = lat_ref[0].astype(jnp.float32) * wscale + shift
    if apply_relu1:
        y = jnp.maximum(y, 0.0)
    if combine_in_io:
        out = jnp.maximum(x_ref[0] + y.astype(o_ref.dtype), 0)
    else:
        out = jnp.maximum(x_ref[0].astype(jnp.float32) + y,
                          0.0).astype(o_ref.dtype)
    o_ref[0] = out


# ----------------------------------------------------------------------------
# Tile selection
# ----------------------------------------------------------------------------
def _pick_fused_channel_tile(C, B, HWp, isz_x, isz_lat, sub, budget):
    """Largest channel tile whose single-pass block fits `budget`, capped so the
    grid keeps several steps (pipeline overlap + megacore)."""
    # Double-buffered streams (x, lateral, out) + in-kernel f32 slab temps.
    per_row = 2 * B * HWp * (2 * isz_x + isz_lat) + 4 * HWp * 4
    max_rows = budget // per_row
    if max_rows >= C:
        tc = C
    elif max_rows >= sub:
        tc = _round_down(max_rows, sub)
    else:
        return 0
    for nblk in (8, 4, 2):                      # prefer >= 8 grid steps
        cap = _round_down(C // nblk, sub)
        if cap >= sub:
            tc = min(tc, cap)
            break
    return tc


def _pick_streaming_tiles(C, HW128, isz_x, isz_lat, sub, budget):
    """(channel tile, spatial tile) for the two-pass path."""
    if C >= 2 * sub:                            # keep >= 2 channel blocks (v7x)
        tc = max(sub, min(128, _round_down(C // 2, sub)))
    else:
        tc = C
    per_elem = 2 * (2 * isz_x + isz_lat) + 12   # apply pass dominates the budget
    ts = _round_down(budget // max(1, tc * per_elem), 128)
    if ts < 128:
        tc = max(min(C, sub), _round_down(budget // (128 * per_elem), sub))
        ts = 128
    ts = min(ts, HW128)
    return tc, ts


# ----------------------------------------------------------------------------
# Wrapper
# ----------------------------------------------------------------------------
def side_and_comb(x, lateral, w, gamma, beta, *, orig_relus=False,
                  force_two_pass=False):
    """x, lateral: [B, C, H, W] (NCHW).  w, gamma, beta: [C].  Returns NCHW."""
    B, C, H, W = x.shape
    assert lateral.shape == (B, C, H, W)
    HW = H * W
    io_dtype = x.dtype
    isz_x = jnp.dtype(io_dtype).itemsize
    isz_lat = jnp.dtype(lateral.dtype).itemsize
    sub = _sublane_multiple(io_dtype, lateral.dtype)
    stream_budget, vmem_limit = _budgets()

    # Zero-copy reshape: channels -> sublanes, spatial -> lanes.  lateral stays
    # in its native dtype (no wrapper-side convert / extra HBM pass).
    x3 = x.reshape(B, C, HW)
    lat3 = lateral.reshape(B, C, HW)
    w2 = jnp.asarray(w, jnp.float32).reshape(C, 1)
    g2 = jnp.asarray(gamma, jnp.float32).reshape(C, 1)
    b2 = jnp.asarray(beta, jnp.float32).reshape(C, 1)

    inv_count = 1.0 / float(B * HW)
    apply_relu1 = not orig_relus
    combine_in_io = isz_x < 4                   # bf16/fp8: add+relu in io dtype

    HW128 = _round_up(HW, 128)                  # lane-dense spatial extent
    tc_fused = _pick_fused_channel_tile(C, B, HW128, isz_x, isz_lat, sub,
                                        stream_budget)

    def _pad_to(a3, hwp):
        return a3 if hwp == HW else jnp.pad(a3, ((0, 0), (0, 0), (0, hwp - HW)))

    if tc_fused > 0 and not force_two_pass:
        # ---------------- single-pass: grid over channel blocks -------------
        tc, HWp = tc_fused, HW128
        xp, lp = _pad_to(x3, HWp), _pad_to(lat3, HWp)
        pad_count = float(B * (HWp - HW))
        out3 = pl.pallas_call(
            functools.partial(_fused_kernel, apply_relu1=apply_relu1,
                              combine_in_io=combine_in_io,
                              inv_count=inv_count, pad_count=pad_count, nb=B),
            out_shape=jax.ShapeDtypeStruct((B, C, HWp), io_dtype),
            grid=(pl.cdiv(C, tc),),
            in_specs=[
                pl.BlockSpec((B, tc, HWp), lambda i: (0, i, 0)),   # x
                pl.BlockSpec((B, tc, HWp), lambda i: (0, i, 0)),   # lateral
                pl.BlockSpec((tc, 1), lambda i: (i, 0)),           # w
                pl.BlockSpec((tc, 1), lambda i: (i, 0)),           # gamma
                pl.BlockSpec((tc, 1), lambda i: (i, 0)),           # beta
            ],
            out_specs=pl.BlockSpec((B, tc, HWp), lambda i: (0, i, 0)),
            compiler_params=pltpu.CompilerParams(
                dimension_semantics=("parallel",),
                vmem_limit_bytes=vmem_limit),
        )(xp, lp, w2, g2, b2)
    else:
        # ---------------- two-pass streaming (huge B*H*W) --------------------
        tc, ts = _pick_streaming_tiles(C, HW128, isz_x, isz_lat, sub,
                                       stream_budget)
        HWp = _round_up(HW, ts)                 # spatial tiles divide evenly
        xp, lp = _pad_to(x3, HWp), _pad_to(lat3, HWp)
        nC, nS = pl.cdiv(C, tc), HWp // ts

        mean, rstd = pl.pallas_call(
            functools.partial(_stats_kernel, inv_count=inv_count, eps=EPS),
            out_shape=(jax.ShapeDtypeStruct((C, 1), jnp.float32),
                       jax.ShapeDtypeStruct((C, 1), jnp.float32)),
            grid=(nC, B, nS),
            in_specs=[
                pl.BlockSpec((1, tc, ts), lambda i, b, s: (b, i, s)),  # lateral
                pl.BlockSpec((tc, 1), lambda i, b, s: (i, 0)),         # w
            ],
            out_specs=(pl.BlockSpec((tc, 1), lambda i, b, s: (i, 0)),
                       pl.BlockSpec((tc, 1), lambda i, b, s: (i, 0))),
            scratch_shapes=[pltpu.VMEM((tc, 1), jnp.float32),
                            pltpu.VMEM((tc, 1), jnp.float32)],
            compiler_params=pltpu.CompilerParams(
                dimension_semantics=("parallel", "arbitrary", "arbitrary"),
                vmem_limit_bytes=vmem_limit),
        )(lp, w2)

        out3 = pl.pallas_call(
            functools.partial(_apply_kernel, apply_relu1=apply_relu1,
                              combine_in_io=combine_in_io),
            out_shape=jax.ShapeDtypeStruct((B, C, HWp), io_dtype),
            grid=(nC, B, nS),
            in_specs=[
                pl.BlockSpec((1, tc, ts), lambda i, b, s: (b, i, s)),  # x
                pl.BlockSpec((1, tc, ts), lambda i, b, s: (b, i, s)),  # lateral
                pl.BlockSpec((tc, 1), lambda i, b, s: (i, 0)),         # w
                pl.BlockSpec((tc, 1), lambda i, b, s: (i, 0)),         # gamma
                pl.BlockSpec((tc, 1), lambda i, b, s: (i, 0)),         # beta
                pl.BlockSpec((tc, 1), lambda i, b, s: (i, 0)),         # mean
                pl.BlockSpec((tc, 1), lambda i, b, s: (i, 0)),         # rstd
            ],
            out_specs=pl.BlockSpec((1, tc, ts), lambda i, b, s: (b, i, s)),
            compiler_params=pltpu.CompilerParams(
                dimension_semantics=("parallel", "parallel", "parallel"),
                vmem_limit_bytes=vmem_limit),
        )(xp, lp, w2, g2, b2, mean, rstd)

    if HWp != HW:
        out3 = out3[:, :, :HW]
    return out3.reshape(B, C, H, W)


# ----------------------------------------------------------------------------
# Pure-JAX reference of the PyTorch forward (NCHW, training-mode BN)
# ----------------------------------------------------------------------------
def _reference(x, lateral, w, gamma, beta, *, orig_relus=False):
    side = lateral * w.reshape(1, -1, 1, 1)
    mean = jnp.mean(side, axis=(0, 2, 3), keepdims=True)
    var = jnp.mean((side - mean) ** 2, axis=(0, 2, 3), keepdims=True)
    side = (side - mean) / jnp.sqrt(var + EPS)
    side = side * gamma.reshape(1, -1, 1, 1) + beta.reshape(1, -1, 1, 1)
    if not orig_relus:
        side = jnp.maximum(side, 0.0)
    return jnp.maximum(x + side, 0.0)


if __name__ == "__main__":
    key = jax.random.PRNGKey(0)
    B, C, H, W = 2, 4, 16, 16
    kx, kl, kw, kg, kb = jax.random.split(key, 5)
    x = jax.random.normal(kx, (B, C, H, W), dtype=jnp.float32)
    lateral = jax.random.normal(kl, (B, C, H, W), dtype=jnp.float32)
    w = jax.random.normal(kw, (C,), dtype=jnp.float32)
    gamma = 1.0 + 0.1 * jax.random.normal(kg, (C,), dtype=jnp.float32)
    beta = 0.1 * jax.random.normal(kb, (C,), dtype=jnp.float32)

    ref = _reference(x, lateral, w, gamma, beta, orig_relus=False)

    # 1) fused single-pass path
    out_fused = jax.block_until_ready(side_and_comb(x, lateral, w, gamma, beta))
    assert out_fused.shape == (B, C, H, W)
    assert jnp.allclose(out_fused, ref, atol=1e-3, rtol=1e-3), "fused mismatch"

    # 2) streaming two-pass path
    out_stream = jax.block_until_ready(
        side_and_comb(x, lateral, w, gamma, beta, force_two_pass=True))
    assert jnp.allclose(out_stream, ref, atol=1e-3, rtol=1e-3), "two-pass mismatch"

    # 3) orig_relus=True variant (no relu on the lateral branch)
    out_orig = jax.block_until_ready(
        side_and_comb(x, lateral, w, gamma, beta, orig_relus=True))
    ref_orig = _reference(x, lateral, w, gamma, beta, orig_relus=True)
    assert jnp.allclose(out_orig, ref_orig, atol=1e-3, rtol=1e-3), "orig_relus mismatch"

    # 4) non-128-multiple spatial size (exercises lane-dense zero padding)
    Hs = Ws = 10
    xs = jax.random.normal(kx, (B, C, Hs, Ws), dtype=jnp.float32)
    ls = jax.random.normal(kl, (B, C, Hs, Ws), dtype=jnp.float32)
    out_pad = jax.block_until_ready(side_and_comb(xs, ls, w, gamma, beta))
    ref_pad = _reference(xs, ls, w, gamma, beta, orig_relus=False)
    assert jnp.allclose(out_pad, ref_pad, atol=1e-3, rtol=1e-3), "padded mismatch"

    # 5) bf16 I/O with larger C (multi-block grid, 16-sublane tiles, bf16 combine)
    Cb = 32
    kx2, kl2, kw2, kg2, kb2 = jax.random.split(jax.random.PRNGKey(1), 5)
    xb = jax.random.normal(kx2, (B, Cb, H, W), dtype=jnp.float32).astype(jnp.bfloat16)
    lb = jax.random.normal(kl2, (B, Cb, H, W), dtype=jnp.float32).astype(jnp.bfloat16)
    wb = jax.random.normal(kw2, (Cb,), dtype=jnp.float32)
    gb = 1.0 + 0.1 * jax.random.normal(kg2, (Cb,), dtype=jnp.float32)
    bb = 0.1 * jax.random.normal(kb2, (Cb,), dtype=jnp.float32)
    out_bf = jax.block_until_ready(side_and_comb(xb, lb, wb, gb, bb))
    ref_bf = _reference(xb.astype(jnp.float32), lb.astype(jnp.float32), wb, gb, bb)
    assert jnp.allclose(out_bf.astype(jnp.float32), ref_bf,
                        atol=7e-2, rtol=7e-2), "bf16 mismatch"

    print("KERNEL_OK")
</pallas_src>

<mosaic_0001>
module attributes {stable_mosaic.version = 11 : i64} {
  func.func @_fused_kernel(%arg0: i32, %arg1: memref<2x4x256xf32, #tpu.memory_space<vmem>>, %arg2: memref<2x4x256xf32, #tpu.memory_space<vmem>>, %arg3: memref<4x1xf32, #tpu.memory_space<vmem>>, %arg4: memref<4x1xf32, #tpu.memory_space<vmem>>, %arg5: memref<4x1xf32, #tpu.memory_space<vmem>>, %arg6: memref<2x4x256xf32, #tpu.memory_space<vmem>>) attributes {dimension_semantics = [#tpu.dimension_semantics<parallel>], iteration_bounds = array<i64: 1>, scalar_prefetch = 0 : i64, scratch_operands = 0 : i64, tpu.core_type = #tpu.core_type<tc>, window_params = [{transform_indices = @transform_0, window_bounds = array<i64: 2, 4, 256>}, {transform_indices = @transform_1, window_bounds = array<i64: 2, 4, 256>}, {transform_indices = @transform_2, window_bounds = array<i64: 4, 1>}, {transform_indices = @transform_3, window_bounds = array<i64: 4, 1>}, {transform_indices = @transform_4, window_bounds = array<i64: 4, 1>}, {transform_indices = @transform_5, window_bounds = array<i64: 2, 4, 256>}]} {
    %c0 = arith.constant 0 : index
    %c0_0 = arith.constant 0 : index
    %0 = vector.load %arg3[%c0, %c0_0] : memref<4x1xf32, #tpu.memory_space<vmem>>, vector<4x1xf32>
    %c0_1 = arith.constant 0 : index
    %c0_2 = arith.constant 0 : index
    %1 = vector.load %arg4[%c0_1, %c0_2] : memref<4x1xf32, #tpu.memory_space<vmem>>, vector<4x1xf32>
    %c0_3 = arith.constant 0 : index
    %c0_4 = arith.constant 0 : index
    %2 = vector.load %arg5[%c0_3, %c0_4] : memref<4x1xf32, #tpu.memory_space<vmem>>, vector<4x1xf32>
    %cst = arith.constant 0.000000e+00 : f32
    %3 = vector.broadcast %cst : f32 to vector<4x1xf32>
    %c0_i32 = arith.constant 0 : i32
    %c2_i32 = arith.constant 2 : i32
    %4 = arith.addi %c0_i32, %c2_i32 : i32
    %c1_i32 = arith.constant 1 : i32
    %5 = scf.for %arg7 = %c0_i32 to %4 step %c1_i32 iter_args(%arg8 = %3) -> (vector<4x1xf32>)  : i32 {
      %21 = arith.index_cast %arg7 : i32 to index
      %c0_18 = arith.constant 0 : index
      %c0_19 = arith.constant 0 : index
      %22 = vector.load %arg2[%21, %c0_18, %c0_19] : memref<2x4x256xf32, #tpu.memory_space<vmem>>, vector<1x4x256xf32>
      %23 = vector.shape_cast %22 : vector<1x4x256xf32> to vector<4x256xf32>
      %24 = vector.broadcast %0 : vector<4x1xf32> to vector<4x256xf32>
      %25 = arith.mulf %23, %24 : vector<4x256xf32>
      %cst_20 = arith.constant dense<0.000000e+00> : vector<4xf32>
      %26 = vector.multi_reduction <add>, %25, %cst_20 [1] : vector<4x256xf32> to vector<4xf32>
      %27 = vector.shape_cast %26 : vector<4xf32> to vector<4x1xf32>
      %28 = arith.addf %arg8, %27 : vector<4x1xf32>
      scf.yield %28 : vector<4x1xf32>
    }
    %c2_i32_5 = arith.constant 2 : i32
    %cst_6 = arith.constant 0.001953125 : f32
    %6 = vector.broadcast %cst_6 : f32 to vector<4x1xf32>
    %7 = arith.mulf %5, %6 : vector<4x1xf32>
    %cst_7 = arith.constant 0.000000e+00 : f32
    %8 = vector.broadcast %cst_7 : f32 to vector<4x1xf32>
    %c0_i32_8 = arith.constant 0 : i32
    %c2_i32_9 = arith.constant 2 : i32
    %9 = arith.addi %c0_i32_8, %c2_i32_9 : i32
    %c1_i32_10 = arith.constant 1 : i32
    %10 = scf.for %arg7 = %c0_i32_8 to %9 step %c1_i32_10 iter_args(%arg8 = %8) -> (vector<4x1xf32>)  : i32 {
      %21 = arith.index_cast %arg7 : i32 to index
      %c0_18 = arith.constant 0 : index
      %c0_19 = arith.constant 0 : index
      %22 = vector.load %arg2[%21, %c0_18, %c0_19] : memref<2x4x256xf32, #tpu.memory_space<vmem>>, vector<1x4x256xf32>
      %23 = vector.shape_cast %22 : vector<1x4x256xf32> to vector<4x256xf32>
      %24 = vector.broadcast %0 : vector<4x1xf32> to vector<4x256xf32>
      %25 = arith.mulf %23, %24 : vector<4x256xf32>
      %26 = vector.broadcast %7 : vector<4x1xf32> to vector<4x256xf32>
      %27 = arith.subf %25, %26 : vector<4x256xf32>
      %28 = arith.mulf %27, %27 : vector<4x256xf32>
      %cst_20 = arith.constant dense<0.000000e+00> : vector<4xf32>
      %29 = vector.multi_reduction <add>, %28, %cst_20 [1] : vector<4x256xf32> to vector<4xf32>
      %30 = vector.shape_cast %29 : vector<4xf32> to vector<4x1xf32>
      %31 = arith.addf %arg8, %30 : vector<4x1xf32>
      scf.yield %31 : vector<4x1xf32>
    }
    %c2_i32_11 = arith.constant 2 : i32
    %cst_12 = arith.constant 0.001953125 : f32
    %11 = vector.broadcast %cst_12 : f32 to vector<4x1xf32>
    %12 = arith.mulf %10, %11 : vector<4x1xf32>
    %cst_13 = arith.constant 9.99999974E-6 : f32
    %13 = vector.broadcast %cst_13 : f32 to vector<4x1xf32>
    %14 = arith.addf %12, %13 : vector<4x1xf32>
    %15 = math.rsqrt %14 : vector<4x1xf32>
    %16 = arith.mulf %15, %1 : vector<4x1xf32>
    %17 = arith.mulf %7, %16 : vector<4x1xf32>
    %18 = arith.subf %2, %17 : vector<4x1xf32>
    %19 = arith.mulf %0, %16 : vector<4x1xf32>
    %c0_i32_14 = arith.constant 0 : i32
    %c2_i32_15 = arith.constant 2 : i32
    %20 = arith.addi %c0_i32_14, %c2_i32_15 : i32
    %c1_i32_16 = arith.constant 1 : i32
    scf.for %arg7 = %c0_i32_14 to %20 step %c1_i32_16  : i32 {
      %21 = arith.index_cast %arg7 : i32 to index
      %c0_18 = arith.constant 0 : index
      %c0_19 = arith.constant 0 : index
      %22 = vector.load %arg2[%21, %c0_18, %c0_19] : memref<2x4x256xf32, #tpu.memory_space<vmem>>, vector<1x4x256xf32>
      %23 = vector.shape_cast %22 : vector<1x4x256xf32> to vector<4x256xf32>
      %24 = vector.broadcast %19 : vector<4x1xf32> to vector<4x256xf32>
      %25 = arith.mulf %23, %24 : vector<4x256xf32>
      %26 = vector.broadcast %18 : vector<4x1xf32> to vector<4x256xf32>
      %27 = arith.addf %25, %26 : vector<4x256xf32>
      %cst_20 = arith.constant 0.000000e+00 : f32
      %28 = vector.broadcast %cst_20 : f32 to vector<4x256xf32>
      %29 = arith.maximumf %27, %28 : vector<4x256xf32>
      %30 = arith.index_cast %arg7 : i32 to index
      %c0_21 = arith.constant 0 : index
      %c0_22 = arith.constant 0 : index
      %31 = vector.load %arg1[%30, %c0_21, %c0_22] : memref<2x4x256xf32, #tpu.memory_space<vmem>>, vector<1x4x256xf32>
      %32 = vector.shape_cast %31 : vector<1x4x256xf32> to vector<4x256xf32>
      %33 = arith.addf %32, %29 : vector<4x256xf32>
      %cst_23 = arith.constant 0.000000e+00 : f32
      %34 = vector.broadcast %cst_23 : f32 to vector<4x256xf32>
      %35 = arith.maximumf %33, %34 : vector<4x256xf32>
      %36 = arith.index_cast %arg7 : i32 to index
      %c0_24 = arith.constant 0 : index
      %c0_25 = arith.constant 0 : index
      %37 = vector.load %arg6[%36, %c0_24, %c0_25] : memref<2x4x256xf32, #tpu.memory_space<vmem>>, vector<1x4x256xf32>
      %38 = vector.shape_cast %37 : vector<1x4x256xf32> to vector<4x256xf32>
      %39 = vector.shape_cast %35 : vector<4x256xf32> to vector<1x4x256xf32>
      tpu.vector_store %arg6[%36, %c0_24, %c0_25], %39 {strides = array<i32>} : memref<2x4x256xf32, #tpu.memory_space<vmem>>, vector<1x4x256xf32>,
    }
    %c2_i32_17 = arith.constant 2 : i32
    return
  }
  func.func @transform_0(%arg0: i32) -> (i32, i32, i32) {
    %c0_i32 = arith.constant 0 : i32
    %c0_i32_0 = arith.constant 0 : i32
    %c0_i32_1 = arith.constant 0 : i32
    return %c0_i32, %arg0, %c0_i32_0 : i32, i32, i32
  }
  func.func @transform_1(%arg0: i32) -> (i32, i32, i32) {
    %c0_i32 = arith.constant 0 : i32
    %c0_i32_0 = arith.constant 0 : i32
    %c0_i32_1 = arith.constant 0 : i32
    return %c0_i32, %arg0, %c0_i32_0 : i32, i32, i32
  }
  func.func @transform_2(%arg0: i32) -> (i32, i32) {
    %c0_i32 = arith.constant 0 : i32
    %c0_i32_0 = arith.constant 0 : i32
    return %arg0, %c0_i32 : i32, i32
  }
  func.func @transform_3(%arg0: i32) -> (i32, i32) {
    %c0_i32 = arith.constant 0 : i32
    %c0_i32_0 = arith.constant 0 : i32
    return %arg0, %c0_i32 : i32, i32
  }
  func.func @transform_4(%arg0: i32) -> (i32, i32) {
    %c0_i32 = arith.constant 0 : i32
    %c0_i32_0 = arith.constant 0 : i32
    return %arg0, %c0_i32 : i32, i32
  }
  func.func @transform_5(%arg0: i32) -> (i32, i32, i32) {
    %c0_i32 = arith.constant 0 : i32
    %c0_i32_0 = arith.constant 0 : i32
    %c0_i32_1 = arith.constant 0 : i32
    return %c0_i32, %arg0, %c0_i32_0 : i32, i32, i32
  }
}

</mosaic_0001>

<llo_original>
// kernel: tpu_custom_call.1
$region0: #{tpu_custom_call.1}
  #allocation0 [shape = 'u32[]', space=smem, size = 0x4, offset = 0x4, fixed_abs, tag = 'smem constant byte address 0x4 - core index']
  #allocation1 [shape = 'u32[144,128]{1,0:T(1,128)}', space=vmem, size = 0x12000, scoped, tag = 'internal scratch']
  %s0 = inlined_call_operand.hbm [shape: f32[2,4,256], index: 0, kind: input, shape index: {}]
  %s1 = inlined_call_operand.vmem [shape: f32[2,4,256], index: 1, kind: input, shape index: {}]
  %s2 = inlined_call_operand.vmem [shape: f32[4,1], index: 2, kind: input, shape index: {}]
  %s3 = inlined_call_operand.vmem [shape: f32[4,1], index: 3, kind: input, shape index: {}]
  %s4 = inlined_call_operand.vmem [shape: f32[4,1], index: 4, kind: input, shape index: {}]
  %s5 = inlined_call_operand.hbm [shape: f32[2,4,256], index: 5, kind: output, shape index: {}]
  %s6 = sld [smem:[#allocation0]]
  $region55: #{tpu_custom_call.1} parent=0
    _
  %s8 = ssub.s32 1, %s6
  %s9 = scalar_select 0, %s8, %s6
  $region1: #{tpu_custom_call.1} parent=0
    #allocation2 [shape = 'u8[8192]{0}', space=vmem, size = 0x2000, scoped, tag = 'input window, operand 0, single buffered']
    #allocation3 [shape = 's32[1]{0}', space=sflag, size = 0x4, scoped, tag = 'scoped memory for tpu_custom_call.1']
    #allocation4 [shape = 's32[1]{0}', space=sflag, size = 0x4, scoped, tag = 'scoped memory for tpu_custom_call.1']
    #allocation5 [shape = 'u8[8192]{0}', space=vmem, size = 0x2000, scoped, tag = 'output window, operand 0, single buffered']
    %10 = vsyncpa [#allocation3], 0
    %11 = vsyncpa [#allocation4], 0
    // Predicated region
    $region2: #{tpu_custom_call.1} parent=1 // pred_check
      _
    $region3: #{tpu_custom_call.1} parent=1 // pred_check_branch
      %13 = sbr.rel (0) target = $region5
    $region4: #{tpu_custom_call.1} parent=1 // pred_region
      %s15 = ssub.s32 256, 256
      %16 = vsyncadd [#allocation3], %s15
      %s17 = sshll.u32 [#allocation2], 4
      %s18 = int_to_ptr.vmem [resolvable:$true] %s17
      %23 = dma.hbm_to_vmem [thread:$0]  %s0, 256, %s18, [#allocation3], 128, 128, 8
    $region5: #{tpu_custom_call.1} parent=1 // pred_fallthru
      _
    // Predicated region
    $region6: #{tpu_custom_call.1} parent=1 // pred_check
      _
    $region7: #{tpu_custom_call.1} parent=1 // pred_check_branch
      %25 = sbr.rel (0) target = $region9
    $region8: #{tpu_custom_call.1} parent=1 // pred_region
      _
    $region9: #{tpu_custom_call.1} parent=1 // pred_fallthru
      _
    // Predicated region
    $region10: #{tpu_custom_call.1} parent=1 // pred_check
      _
    $region11: #{tpu_custom_call.1} parent=1 // pred_check_branch
      %27 = sbr.rel (0) target = $region13
    $region12: #{tpu_custom_call.1} parent=1 // pred_region
      _
    $region13: #{tpu_custom_call.1} parent=1 // pred_fallthru
      _
    // Predicated region
    $region14: #{tpu_custom_call.1} parent=1 // pred_check
      _
    $region15: #{tpu_custom_call.1} parent=1 // pred_check_branch
      %29 = sbr.rel (0) target = $region17
    $region16: #{tpu_custom_call.1} parent=1 // pred_region
      _
    $region17: #{tpu_custom_call.1} parent=1 // pred_fallthru
      _
    // Predicated region
    $region18: #{tpu_custom_call.1} parent=1 // pred_check
      _
    $region19: #{tpu_custom_call.1} parent=1 // pred_check_branch
      %31 = sbr.rel (0) target = $region21
    $region20: #{tpu_custom_call.1} parent=1 // pred_region
      _
    $region21: #{tpu_custom_call.1} parent=1 // pred_fallthru
      _
    // Predicated region
    $region22: #{tpu_custom_call.1} parent=1 // pred_check
      _
    $region23: #{tpu_custom_call.1} parent=1 // pred_check_branch
      %33 = sbr.rel (0) target = $region25
    $region24: #{tpu_custom_call.1} parent=1 // pred_region
      %34 = dma.done [#allocation3], 256
    $region25: #{tpu_custom_call.1} parent=1 // pred_fallthru
      _
    %v35 = vld [vmem:[%s2] sm:$0xf]
    %v36 = vld [vmem:[%s3] sm:$0xf]
    %v37 = vld [vmem:[%s4] sm:$0xf]
    loop: start=0, step=1, limit=2
    $region26: #{tpu_custom_call.1} parent=1 // loop_pre_header
      _
    $region27: #{tpu_custom_call.1} parent=1 // loop_header
      %s39 = sphi 0, %s43
      %p40 = scmp.ge.s32.totalorder %s39, 2
      %v44 = vphi 0.0, %v71
    $region28: #{tpu_custom_call.1} parent=1 // loop_header_branch
      %42 = sbr.rel (%p40) target = $region32
    $region29: #{tpu_custom_call.1} parent=1 // loop_body
      %s45 = smul.u32 %s39, 2
      %s46 = smul.addr %s45, 4
      %s47 = scalar_lea.vmem %s1, %s46
      %v48 = vld [vmem:[%s47] sm:$0xff]
      %50 = vset.pattern.permute.xlu0 0
      %51 = vperm.xlu0 %50, %v35
      %v52 = vpop.permute.xlu0 %51
      %v54 = vunpack.c.l.s4 839922192
      %v55 = vunpack.c.0.s8 %v54
      %v56 = vlaneseq
      %v57 = vshrl.u32 %v56, 7
      %v58 = vsub.s32 %v55, %v57
      %v59 = vrot.slane %v52, %v58
      %v61 = vmul.f32 %v48, %v59
      %v63 = vcombine.high %v61, %v61
      %vm65 = vcmask 1043456
      %v66 = vsel %vm65, %v61, 0.0
      %v67 = vsel %vm65, %v63, 0.0
      %v68 = vadd.f32 %v66, %v67
      %69 = vadd.xlane.f32.xlu0 %v68
      %v70 = vpop.xlane.xlu0 %69
      %v71 = vadd.f32 %v44, %v70
    $region30: #{tpu_custom_call.1} parent=1 // loop_footer
      %s43 = sadd.s32 1, %s39
    $region31: #{tpu_custom_call.1} parent=1 // loop_footer_branch
      %38 = sbr.rel target = $region27
    $region32: #{tpu_custom_call.1} parent=1 // loop_exit
      _
    %v72 = vmul.f32 %v44, 0.001953125
    loop: start=0, step=1, limit=2
    $region33: #{tpu_custom_call.1} parent=1 // loop_pre_header
      _
    $region34: #{tpu_custom_call.1} parent=1 // loop_header
      %s74 = sphi 0, %s78
      %p75 = scmp.ge.s32.totalorder %s74, 2
      %v79 = vphi 0.0, %v117
    $region35: #{tpu_custom_call.1} parent=1 // loop_header_branch
      %77 = sbr.rel (%p75) target = $region39
    $region36: #{tpu_custom_call.1} parent=1 // loop_body
      %s80 = smul.u32 %s74, 2
      %s81 = smul.addr %s80, 4
      %s82 = scalar_lea.vmem %s1, %s81
      %v83 = vld [vmem:[%s82] sm:$0xff]
      %85 = vset.pattern.permute.xlu0 0
      %86 = vperm.xlu0 %85, %v35
      %v87 = vpop.permute.xlu0 %86
      %v89 = vunpack.c.l.s4 839922192
      %v90 = vunpack.c.0.s8 %v89
      %v91 = vlaneseq
      %v92 = vshrl.u32 %v91, 7
      %v93 = vsub.s32 %v90, %v92
      %v94 = vrot.slane %v87, %v93
      %v96 = vmul.f32 %v83, %v94
      %v99 = vunpack.c.l.s4 839922192
      %v100 = vunpack.c.0.s8 %v99
      %v101 = vlaneseq
      %v102 = vshrl.u32 %v101, 7
      %v103 = vsub.s32 %v100, %v102
      %v104 = vrot.slane %v72, %v103
      %v106 = vsub.f32 %v96, %v104
      %v107 = vmul.f32 %v106, %v106
      %v109 = vcombine.high %v107, %v107
      %vm111 = vcmask 1043456
      %v112 = vsel %vm111, %v107, 0.0
      %v113 = vsel %vm111, %v109, 0.0
      %v114 = vadd.f32 %v112, %v113
      %115 = vadd.xlane.f32.xlu0 %v114
      %v116 = vpop.xlane.xlu0 %115
      %v117 = vadd.f32 %v79, %v116
    $region37: #{tpu_custom_call.1} parent=1 // loop_footer
      %s78 = sadd.s32 1, %s74
    $region38: #{tpu_custom_call.1} parent=1 // loop_footer_branch
      %73 = sbr.rel target = $region34
    $region39: #{tpu_custom_call.1} parent=1 // loop_exit
      _
    %v118 = vmul.f32 %v79, 0.001953125
    %v119 = vadd.f32 %v118, 1e-05
    %v120 = vrsqrt.pop %v119
    %v121 = vmul.f32 %v120, %v36
    %v122 = vmul.f32 %v72, %v121
    %v123 = vsub.f32 %v37, %v122
    %v124 = vmul.f32 %v35, %v121
    loop: start=0, step=1, limit=2
    $region40: #{tpu_custom_call.1} parent=1 // loop_pre_header
      _
    $region41: #{tpu_custom_call.1} parent=1 // loop_header
      %s126 = sphi 0, %s130
      %p127 = scmp.ge.s32.totalorder %s126, 2
    $region42: #{tpu_custom_call.1} parent=1 // loop_header_branch
      %129 = sbr.rel (%p127) target = $region46
    $region43: #{tpu_custom_call.1} parent=1 // loop_body
      %s131 = smul.u32 %s126, 2
      %s132 = smul.addr %s131, 4
      %s133 = scalar_lea.vmem %s1, %s132
      %v134 = vld [vmem:[%s133] sm:$0xff]
      %136 = vset.pattern.permute.xlu0 0
      %137 = vperm.xlu0 %136, %v124
      %v138 = vpop.permute.xlu0 %137
      %v140 = vunpack.c.l.s4 839922192
      %v141 = vunpack.c.0.s8 %v140
      %v142 = vlaneseq
      %v143 = vshrl.u32 %v142, 7
      %v144 = vsub.s32 %v141, %v143
      %v145 = vrot.slane %v138, %v144
      %v147 = vmul.f32 %v134, %v145
      %149 = vset.pattern.permute.xlu0 0
      %150 = vperm.xlu0 %149, %v123
      %v151 = vpop.permute.xlu0 %150
      %v153 = vunpack.c.l.s4 839922192
      %v154 = vunpack.c.0.s8 %v153
      %v155 = vlaneseq
      %v156 = vshrl.u32 %v155, 7
      %v157 = vsub.s32 %v154, %v156
      %v158 = vrot.slane %v151, %v157
      %v160 = vadd.f32 %v147, %v158
      %v161 = vmax.f32 %v160, 0.0
      %s162 = smul.addr %s131, 4
      %s163 = scalar_lea.vmem [#allocation2], %s162
      %v164 = vld [vmem:[%s163] sm:$0xff]
      %v165 = vadd.f32 %v164, %v161
      %v166 = vmax.f32 %v165, 0.0
      %s167 = smul.addr %s131, 4
      %s168 = scalar_lea.vmem [#allocation5], %s167
      %169 = vst [vmem:[%s168] sm:$0xff] %v166
    $region44: #{tpu_custom_call.1} parent=1 // loop_footer
      %s130 = sadd.s32 1, %s126
    $region45: #{tpu_custom_call.1} parent=1 // loop_footer_branch
      %125 = sbr.rel target = $region41
    $region46: #{tpu_custom_call.1} parent=1 // loop_exit
      _
    // Predicated region
    $region47: #{tpu_custom_call.1} parent=1 // pred_check
      _
    $region48: #{tpu_custom_call.1} parent=1 // pred_check_branch
      %171 = sbr.rel (0) target = $region50
    $region49: #{tpu_custom_call.1} parent=1 // pred_region
      %s173 = ssub.s32 256, 256
      %174 = vsyncadd [#allocation4], %s173
      %s175 = sshll.u32 [#allocation5], 4
      %s176 = int_to_ptr.vmem [resolvable:$true] %s175
      %181 = dma.vmem_to_hbm [thread:$0]  %s176, 256, %s5, [#allocation4], 128, 128, 8
    $region50: #{tpu_custom_call.1} parent=1 // pred_fallthru
      _
    // Predicated region
    $region51: #{tpu_custom_call.1} parent=1 // pred_check
      _
    $region52: #{tpu_custom_call.1} parent=1 // pred_check_branch
      %183 = sbr.rel (0) target = $region54
    $region53: #{tpu_custom_call.1} parent=1 // pred_region
      %184 = dma.done [#allocation4], 256
    $region54: #{tpu_custom_call.1} parent=1 // pred_fallthru
      _
    %185 = vsyncpa [#allocation3], 1
    %186 = vsyncpa [#allocation4], 1

</llo_original>
